<compile_context>
chip_gen: v7x
topology: tpu7x:2x2x1
jax: 0.10.0
libtpu: 0.0.40
codegen_flags: <defaults>
</compile_context>

<pallas_src>
import jax
import jax.numpy as jnp
from jax.experimental import pallas as pl
from jax.experimental.pallas import tpu as pltpu


def _normal_kernel(x_ref, const_ref, o_ref):
    # x_ref/o_ref: (TR, TL) tile. const_ref: (2, TR, 1) f32 per-row constants:
    #   const_ref[0] = shift, const_ref[1] = 1/scale.
    shift = const_ref[0]                      # (TR, 1) f32
    inv_scale = const_ref[1]                  # (TR, 1) f32
    xf = x_ref[...].astype(jnp.float32)       # promote; hidden under HBM-bound DMA
    o_ref[...] = ((xf - shift) * inv_scale).astype(o_ref.dtype)


def _largest_divisor(extent, unit, cap):
    """Largest divisor of `extent` that is a multiple of `unit` and <= cap (or None)."""
    best = None
    cap = min(cap, extent)
    d = unit
    while d <= cap:
        if extent % d == 0:
            best = d
        d += unit
    return best


def normal_forward(x, shift, scale, *,
                   target_block_bytes=4 * 1024 * 1024,
                   min_grid_steps=2):
    """x: (N, C, H, W); shift/scale: broadcastable (1, C, 1, 1) buffers.

    Returns (x - shift) / scale, computed as (x - shift) * (1/scale) in f32.
    """
    N, C, H, W = x.shape
    R, L = N * C, H * W
    dtype = x.dtype
    elem = jnp.dtype(dtype).itemsize

    # ---- sublane fold: make the row count a multiple of 8 when the lane extent
    # allows it (metadata-only reshape; every folded row stays channel-pure).
    fold = 1
    if R % 8 != 0:
        for f in (8, 4, 2):
            if (R * f) % 8 == 0 and L % (f * 128) == 0:
                fold = f
                break
    Rf, Lf = R * fold, L // fold

    x2 = x.reshape(Rf, Lf)

    # ---- lane padding guard: keep every output block lane-dense / unmasked.
    Lp = ((Lf + 127) // 128) * 128
    padded = Lp != Lf
    if padded:  # rare (odd H*W); one extra copy, but no masked vst.msk stores
        x2 = jnp.pad(x2, ((0, 0), (0, Lp - Lf)))

    # ---- per-row constants in f32 (channel pattern repeats N times, then each
    # row is duplicated `fold` times). Single tiny (2, Rf, 1) operand.
    shift_c = jnp.asarray(shift, jnp.float32).reshape(C)
    inv_c = 1.0 / jnp.asarray(scale, jnp.float32).reshape(C)
    shift_rows = jnp.repeat(jnp.tile(shift_c, N), fold).reshape(Rf, 1)
    inv_rows = jnp.repeat(jnp.tile(inv_c, N), fold).reshape(Rf, 1)
    consts = jnp.stack([shift_rows, inv_rows], axis=0)          # (2, Rf, 1) f32

    # ---- row tile: only split rows when a single row-block at the minimum lane
    # tile would already exceed the per-block budget (very-tall-R guard).
    row_bytes = 128 * elem
    if Rf % 8 != 0 or Rf * row_bytes <= target_block_bytes:
        TR = Rf
    else:
        TR = _largest_divisor(Rf, 8, max(8, target_block_bytes // row_bytes)) or Rf
    row_steps = Rf // TR if Rf % TR == 0 else pl.cdiv(Rf, TR)

    # ---- lane tile: biggest 128-multiple divisor of Lp within the block budget,
    # additionally capped so the grid has >= min_grid_steps steps (v7x: 2 TCs).
    lane_budget = max(128, (target_block_bytes // max(TR * elem, 1)) // 128 * 128)
    lane_cap = lane_budget
    if row_steps < min_grid_steps and Lp >= min_grid_steps * 128:
        lane_cap = min(lane_cap, max(128, (Lp // min_grid_steps) // 128 * 128))
    TL = _largest_divisor(Lp, 128, lane_cap) or Lp

    grid = (row_steps, Lp // TL)

    # Double-buffered in+out tiles plus the tiny constant block, with headroom.
    tile_bytes = TR * TL * elem
    vmem_limit = max(32 * 1024 * 1024, 4 * tile_bytes + 2 * 8 * TR * 4 + (1 << 20))

    out = pl.pallas_call(
        _normal_kernel,
        out_shape=jax.ShapeDtypeStruct((Rf, Lp), dtype),
        grid=grid,
        in_specs=[
            pl.BlockSpec((TR, TL), lambda i, j: (i, j)),       # data tile
            pl.BlockSpec((2, TR, 1), lambda i, j: (0, i, 0)),  # shift & 1/scale rows
        ],
        out_specs=pl.BlockSpec((TR, TL), lambda i, j: (i, j)),
        compiler_params=pltpu.CompilerParams(
            dimension_semantics=("parallel", "parallel"),
            vmem_limit_bytes=int(vmem_limit),
        ),
    )(x2, consts)

    if padded:
        out = out[:, :Lf]
    return out.reshape(N, C, H, W)


if __name__ == "__main__":
    # Buffers straight from the module's __init__.
    shift = jnp.array([-0.03, -0.088, -0.188], dtype=jnp.float32).reshape(1, 3, 1, 1)
    scale = jnp.array([0.458, 0.448, 0.45], dtype=jnp.float32).reshape(1, 3, 1, 1)

    key = jax.random.PRNGKey(0)
    k1, k2, k3 = jax.random.split(key, 3)

    # 1) Base case (C must be 3 to match the registered buffers).
    x = jax.random.normal(k1, (2, 3, 16, 16), dtype=jnp.float32)
    ref = (x - shift) / scale
    out = jax.block_until_ready(normal_forward(x, shift, scale))
    assert out.shape == ref.shape and out.dtype == ref.dtype
    assert jnp.allclose(out, ref, rtol=1e-5, atol=1e-6)

    # 2) Force the multi-step lane-tiled path (TL=128 -> lane grid of 2).
    out2 = jax.block_until_ready(
        normal_forward(x, shift, scale, target_block_bytes=4096))
    assert jnp.allclose(out2, ref, rtol=1e-5, atol=1e-6)

    # 3) Sublane-fold path: N*C = 3 rows folded x8 -> 24 rows of 128 lanes.
    xf = jax.random.normal(k2, (1, 3, 32, 32), dtype=jnp.float32)
    reff = (xf - shift) / scale
    outf = jax.block_until_ready(normal_forward(xf, shift, scale))
    assert jnp.allclose(outf, reff, rtol=1e-5, atol=1e-6)

    # 4) Odd H*W (lane-padding path), f32 and bf16 (f32 internal compute).
    xo = jax.random.normal(k3, (2, 3, 10, 10), dtype=jnp.float32)
    refo = (xo - shift) / scale
    outo = jax.block_until_ready(normal_forward(xo, shift, scale))
    assert jnp.allclose(outo, refo, rtol=1e-5, atol=1e-6)

    xb = xo.astype(jnp.bfloat16)
    refb = ((xb.astype(jnp.float32) - shift) / scale).astype(jnp.bfloat16)
    outb = jax.block_until_ready(normal_forward(xb, shift, scale))
    assert outb.dtype == jnp.bfloat16
    assert jnp.allclose(outb.astype(jnp.float32), refb.astype(jnp.float32),
                        rtol=1e-2, atol=1e-2)

    print("KERNEL_OK")
</pallas_src>

<mosaic_0001>
module attributes {stable_mosaic.version = 11 : i64} {
  func.func @_normal_kernel(%arg0: i32, %arg1: i32, %arg2: memref<6x128xf32, #tpu.memory_space<vmem>>, %arg3: memref<2x6x1xf32, #tpu.memory_space<vmem>>, %arg4: memref<6x128xf32, #tpu.memory_space<vmem>>) attributes {dimension_semantics = [#tpu.dimension_semantics<parallel>, #tpu.dimension_semantics<parallel>], iteration_bounds = array<i64: 1, 2>, scalar_prefetch = 0 : i64, scratch_operands = 0 : i64, tpu.core_type = #tpu.core_type<tc>, window_params = [{transform_indices = @transform_0, window_bounds = array<i64: 6, 128>}, {transform_indices = @transform_1, window_bounds = array<i64: 2, 6, 1>}, {transform_indices = @transform_2, window_bounds = array<i64: 6, 128>}]} {
    %c0 = arith.constant 0 : index
    %c0_0 = arith.constant 0 : index
    %c0_1 = arith.constant 0 : index
    %0 = vector.load %arg3[%c0, %c0_0, %c0_1] : memref<2x6x1xf32, #tpu.memory_space<vmem>>, vector<1x6x1xf32>
    %1 = vector.shape_cast %0 : vector<1x6x1xf32> to vector<6x1xf32>
    %c1 = arith.constant 1 : index
    %c0_2 = arith.constant 0 : index
    %c0_3 = arith.constant 0 : index
    %2 = vector.load %arg3[%c1, %c0_2, %c0_3] : memref<2x6x1xf32, #tpu.memory_space<vmem>>, vector<1x6x1xf32>
    %3 = vector.shape_cast %2 : vector<1x6x1xf32> to vector<6x1xf32>
    %c0_4 = arith.constant 0 : index
    %c0_5 = arith.constant 0 : index
    %4 = vector.load %arg2[%c0_4, %c0_5] : memref<6x128xf32, #tpu.memory_space<vmem>>, vector<6x128xf32>
    %5 = vector.broadcast %1 : vector<6x1xf32> to vector<6x128xf32>
    %6 = arith.subf %4, %5 : vector<6x128xf32>
    %7 = vector.broadcast %3 : vector<6x1xf32> to vector<6x128xf32>
    %8 = arith.mulf %6, %7 : vector<6x128xf32>
    %c0_6 = arith.constant 0 : index
    %c0_7 = arith.constant 0 : index
    %9 = vector.load %arg4[%c0_6, %c0_7] : memref<6x128xf32, #tpu.memory_space<vmem>>, vector<6x128xf32>
    tpu.vector_store %arg4[%c0_6, %c0_7], %8 {strides = array<i32>} : memref<6x128xf32, #tpu.memory_space<vmem>>, vector<6x128xf32>,
    return
  }
  func.func @transform_0(%arg0: i32, %arg1: i32) -> (i32, i32) {
    %c0_i32 = arith.constant 0 : i32
    return %arg0, %arg1 : i32, i32
  }
  func.func @transform_1(%arg0: i32, %arg1: i32) -> (i32, i32, i32) {
    %c0_i32 = arith.constant 0 : i32
    %c0_i32_0 = arith.constant 0 : i32
    %c0_i32_1 = arith.constant 0 : i32
    return %c0_i32, %arg0, %c0_i32_0 : i32, i32, i32
  }
  func.func @transform_2(%arg0: i32, %arg1: i32) -> (i32, i32) {
    %c0_i32 = arith.constant 0 : i32
    return %arg0, %arg1 : i32, i32
  }
}

</mosaic_0001>

<llo_original>
// kernel: tpu_custom_call.1
$region0: #{tpu_custom_call.1}
  #allocation0 [shape = 'u32[]', space=smem, size = 0x4, offset = 0x4, fixed_abs, tag = 'smem constant byte address 0x4 - core index']
  #allocation1 [shape = 'u32[144,128]{1,0:T(1,128)}', space=vmem, size = 0x12000, scoped, tag = 'internal scratch']
  %s0 = inlined_call_operand.vmem [shape: f32[6,256], index: 0, kind: input, shape index: {}]
  %s1 = inlined_call_operand.vmem [shape: f32[2,6,1], index: 1, kind: input, shape index: {}]
  %s2 = inlined_call_operand.hbm [shape: f32[6,256], index: 2, kind: output, shape index: {}]
  %s3 = sld [smem:[#allocation0]]
  $region41: #{tpu_custom_call.1} parent=0
    _
  %s5 = ssub.s32 1, %s3
  %s6 = scalar_select 0, %s5, %s3
  $region1: #{tpu_custom_call.1} parent=0
    #allocation2 [shape = 'u8[8192]{0}', space=vmem, size = 0x2000, scoped, tag = 'output window, operand 0']
    #allocation3 [shape = 's32[2]{0}', space=sflag, size = 0x8, scoped, tag = 'scoped memory for tpu_custom_call.1']
    %7 = vsyncpa [#allocation3], 0
    %s8 = scalar_lea.sflag [#allocation3], 1
    %9 = vsyncpa %s8, 0
    loop: start=0, step=1, limit=4
    $region2: #{tpu_custom_call.1} parent=1 // loop_pre_header
      _
    $region3: #{tpu_custom_call.1} parent=1 // loop_header
      %s11 = sphi 0, %s15
      %p12 = scmp.ge.s32.totalorder %s11, 4
      %s18 = sphi 0, %s30
      %s19 = sphi 0, %s26
      %s20 = sphi 0, %s18
      %s21 = sphi 0, %s19
      %s22 = sphi 0, %s20
      %s23 = sphi 0, %s21
      %s35 = sphi 0, %s37
      %s38 = sphi 0, %s35
      %s39 = sphi 0, %s38
      %s55 = sphi 0, %s39
      %s61 = sphi 0, %s63
      %s64 = sphi 0, %s61
      %s65 = sphi 0, %s64
      %s81 = sphi 0, %s65
      %s89 = sphi 0, %s91
      %s92 = sphi 0, %s89
      %s93 = sphi 0, %s92
      %s109 = sphi 0, %s93
    $region4: #{tpu_custom_call.1} parent=1 // loop_header_branch
      %14 = sbr.rel (%p12) target = $region8
    $region5: #{tpu_custom_call.1} parent=1 // loop_body
      %s16 = ssub.s32 %s11, 1
      %s17 = ssub.s32 %s11, 2
      %s24 = sadd.s32 1, %s19
      %p25 = scmp.ge.s32.totalorder %s24, 2
      %s26 = scalar_select %p25, 0, %s24
      %s27 = sadd.s32 1, %s18
      %s28 = scalar_select %p25, %s27, %s18
      %p29 = scmp.ge.s32.totalorder %s28, 1
      %s30 = scalar_select %p29, 0, %s28
      %s31 = ssub.s32 %s18, %s30
      %s32 = ssub.s32 %s19, %s26
      %s33 = sor.u32 %s31, %s32
      %p34 = scmp.eq.s32.totalorder %s33, 0
      %s36 = sadd.s32 %s35, 1
      %s37 = scalar_select %p34, %s35, %s36
      %p40 = pneg %p34
      %p41 = scmp.eq.s32.totalorder %s11, 1
      %p42 = por %p40, %p41
      %p43 = scmp.ne.s32.totalorder %s35, %s38
      %p44 = scmp.eq.s32.totalorder %s11, 0
      %p45 = por %p43, %p44
      %p46 = scmp.ne.s32.totalorder %s35, %s38
      %p47 = scmp.eq.s32.totalorder %s16, 1
      %p48 = por %p46, %p47
      %p49 = scmp.ne.s32.totalorder %s38, %s39
      %p50 = scmp.eq.s32.totalorder %s16, 0
      %p51 = por %p49, %p50
      %p52 = scmp.ne.s32.totalorder %s38, %s39
      %p53 = scmp.eq.s32.totalorder %s17, 1
      %p54 = por %p52, %p53
      %p56 = scmp.ne.s32.totalorder %s39, %s55
      %p57 = scmp.eq.s32.totalorder %s17, 0
      %p58 = por %p56, %p57
      %s59 = ssub.s32 %s18, %s30
      %p60 = scmp.eq.s32.totalorder %s59, 0
      %s62 = sadd.s32 %s61, 1
      %s63 = scalar_select %p60, %s61, %s62
      %p66 = pneg %p60
      %p67 = scmp.eq.s32.totalorder %s11, 1
      %p68 = por %p66, %p67
      %p69 = scmp.ne.s32.totalorder %s61, %s64
      %p70 = scmp.eq.s32.totalorder %s11, 0
      %p71 = por %p69, %p70
      %p72 = scmp.ne.s32.totalorder %s61, %s64
      %p73 = scmp.eq.s32.totalorder %s16, 1
      %p74 = por %p72, %p73
      %p75 = scmp.ne.s32.totalorder %s64, %s65
      %p76 = scmp.eq.s32.totalorder %s16, 0
      %p77 = por %p75, %p76
      %p78 = scmp.ne.s32.totalorder %s64, %s65
      %p79 = scmp.eq.s32.totalorder %s17, 1
      %p80 = por %p78, %p79
      %p82 = scmp.ne.s32.totalorder %s65, %s81
      %p83 = scmp.eq.s32.totalorder %s17, 0
      %p84 = por %p82, %p83
      %s85 = ssub.s32 %s18, %s30
      %s86 = ssub.s32 %s19, %s26
      %s87 = sor.u32 %s85, %s86
      %p88 = scmp.eq.s32.totalorder %s87, 0
      %s90 = sadd.s32 %s89, 1
      %s91 = scalar_select %p88, %s89, %s90
      %p94 = pneg %p88
      %p95 = scmp.eq.s32.totalorder %s11, 1
      %p96 = por %p94, %p95
      %p97 = scmp.ne.s32.totalorder %s89, %s92
      %p98 = scmp.eq.s32.totalorder %s11, 0
      %p99 = por %p97, %p98
      %p100 = scmp.ne.s32.totalorder %s89, %s92
      %p101 = scmp.eq.s32.totalorder %s16, 1
      %p102 = por %p100, %p101
      %p103 = scmp.ne.s32.totalorder %s92, %s93
      %p104 = scmp.eq.s32.totalorder %s16, 0
      %p105 = por %p103, %p104
      %p106 = scmp.ne.s32.totalorder %s92, %s93
      %p107 = scmp.eq.s32.totalorder %s17, 1
      %p108 = por %p106, %p107
      %p110 = scmp.ne.s32.totalorder %s93, %s109
      %p111 = scmp.eq.s32.totalorder %s17, 0
      %p112 = por %p110, %p111
      %p113 = scmp.le.s32.totalorder 1, %s11
      %p114 = scmp.lt.s32.totalorder %s11, 3
      %p115 = pnand %p113, %p114
      %p116 = pneg %p115
      // Predicated region
      $region9: #{tpu_custom_call.1} parent=5 // pred_check
        _
      $region10: #{tpu_custom_call.1} parent=5 // pred_check_branch
        %118 = sbr.rel (%p115) target = $region12
      $region11: #{tpu_custom_call.1} parent=5 // pred_region
        %s119 = ssub.s32 %s11, 1
        // Predicated region
        $region13: #{tpu_custom_call.1} parent=11 // pred_check
          %p120 = pneg %p77
        $region14: #{tpu_custom_call.1} parent=11 // pred_check_branch
          %122 = sbr.rel (%p120) target = $region16
        $region15: #{tpu_custom_call.1} parent=11 // pred_region
          %p123 = scmp.lt.s32.totalorder %s20, 0
          %s124 = scalar_select %p123, %s20, 0
          %s125 = smul.addr %s124, 8
          %s126 = scalar_lea.vmem %s1, %s125
        $region16: #{tpu_custom_call.1} parent=11 // pred_fallthru
          _
      $region12: #{tpu_custom_call.1} parent=5 // pred_fallthru
        _
      %p127 = scmp.lt.s32.totalorder %s11, 2
      // Predicated region
      $region17: #{tpu_custom_call.1} parent=5 // pred_check
        %p128 = pneg %p127
      $region18: #{tpu_custom_call.1} parent=5 // pred_check_branch
        %130 = sbr.rel (%p128) target = $region20
      $region19: #{tpu_custom_call.1} parent=5 // pred_region
        // Predicated region
        $region21: #{tpu_custom_call.1} parent=19 // pred_check
          %p131 = pneg %p45
        $region22: #{tpu_custom_call.1} parent=19 // pred_check_branch
          %133 = sbr.rel (%p131) target = $region24
        $region23: #{tpu_custom_call.1} parent=19 // pred_region
          %p134 = scmp.lt.s32.totalorder %s18, 0
          %s135 = scalar_select %p134, %s18, 0
          %p136 = scmp.lt.s32.totalorder %s19, 1
          %s137 = scalar_select %p136, %s19, 1
          %s138 = smul.addr %s135, 2
          %s139 = sadd.s32 %s137, %s138
          %s140 = smul.addr %s139, 8
          %s141 = scalar_lea.vmem %s0, %s140
        $region24: #{tpu_custom_call.1} parent=19 // pred_fallthru
          _
      $region20: #{tpu_custom_call.1} parent=5 // pred_fallthru
        _
      %p142 = scmp.le.s32.totalorder 1, %s11
      %p143 = scmp.lt.s32.totalorder %s11, 3
      %p144 = pnand %p142, %p143
      %p145 = pneg %p144
      // Predicated region
      $region25: #{tpu_custom_call.1} parent=5 // pred_check
        _
      $region26: #{tpu_custom_call.1} parent=5 // pred_check_branch
        %147 = sbr.rel (%p144) target = $region28
      $region27: #{tpu_custom_call.1} parent=5 // pred_region
        %s148 = ssub.s32 %s11, 1
        %p149 = scmp.lt.s32.totalorder %s20, 0
        %s150 = scalar_select %p149, %s20, 0
        %p151 = scmp.lt.s32.totalorder %s21, 1
        %s152 = scalar_select %p151, %s21, 1
        %s153 = smul.addr %s150, 2
        %s154 = sadd.s32 %s152, %s153
        %s155 = smul.addr %s154, 8
        %s156 = scalar_lea.vmem %s0, %s155
        %p157 = pneg %p51
        %p158 = pneg %p48
        %p159 = scmp.lt.s32.totalorder %s20, 0
        %s160 = scalar_select %p159, %s20, 0
        %s161 = smul.addr %s160, 8
        %s162 = scalar_lea.vmem %s1, %s161
        %p163 = pneg %p77
        %p164 = pneg %p74
        %p165 = pneg %p105
        %p166 = pneg %p102
        %s167 = sand.u32 %s92, 1
        %s168 = scalar_lea.sflag [#allocation3], %s167
        %s169 = sand.u32 %s92, 1
        %s170 = smul.addr %s169, 8
        %s171 = scalar_lea.vmem [#allocation2], %s170
        %p172 = scmp.lt.s32.totalorder %s20, 0
        %s173 = scalar_select %p172, %s20, 0
        %p174 = scmp.lt.s32.totalorder %s21, 1
        %s175 = scalar_select %p174, %s21, 1
        %s176 = smul.addr %s173, 2
        %s177 = sadd.s32 %s175, %s176
        %s178 = smul.addr %s177, 8
        %s179 = scalar_lea.vmem %s0, %s178
        %p180 = scmp.lt.s32.totalorder %s20, 0
        %s181 = scalar_select %p180, %s20, 0
        %s182 = smul.addr %s181, 8
        %s183 = scalar_lea.vmem %s1, %s182
        %v184 = vld [vmem:[%s183] sm:$0x3f]
        %s185 = scalar_lea.vmem %s183, 8
        %v186 = vld [vmem:[%s185] sm:$0x3f]
        %v187 = vld [vmem:[%s179] sm:$0x3f]
        %189 = vset.pattern.permute.xlu0 0
        %190 = vperm.xlu0 %189, %v184
        %v191 = vpop.permute.xlu0 %190
        %v193 = vsub.f32 %v187, %v191
        %195 = vset.pattern.permute.xlu0 0
        %196 = vperm.xlu0 %195, %v186
        %v197 = vpop.permute.xlu0 %196
        %v199 = vmul.f32 %v193, %v197
        %200 = vst [vmem:[%s171] sm:$0x3f] %v199
        %s201 = sand.u32 %s92, 1
        %s202 = scalar_lea.sflag [#allocation3], %s201
        %s203 = sand.u32 %s92, 1
        %s204 = smul.addr %s203, 8
        %s205 = scalar_lea.vmem [#allocation2], %s204
        // Predicated region
        $region29: #{tpu_custom_call.1} parent=27 // pred_check
          %p206 = pneg %p102
        $region30: #{tpu_custom_call.1} parent=27 // pred_check_branch
          %208 = sbr.rel (%p206) target = $region32
        $region31: #{tpu_custom_call.1} parent=27 // pred_region
          %s210 = ssub.s32 128, 128
          %211 = vsyncadd %s202, %s210
          %s212 = smul.addr %s20, 2
          %s213 = sadd.s32 %s21, %s212
          %s214 = smul.addr %s213, 128
          %s215 = scalar_lea.hbm %s2, %s214
          %s217 = sshll.u32 %s205, 4
          %s218 = int_to_ptr.vmem [resolvable:$true] %s217
          %220 = dma.vmem_to_hbm [thread:$0]  %s218, 128, %s215, %s202
        $region32: #{tpu_custom_call.1} parent=27 // pred_fallthru
          _
      $region28: #{tpu_custom_call.1} parent=5 // pred_fallthru
        _
      %p221 = scmp.le.s32.totalorder 2, %s11
      // Predicated region
      $region33: #{tpu_custom_call.1} parent=5 // pred_check
        %p222 = pneg %p221
      $region34: #{tpu_custom_call.1} parent=5 // pred_check_branch
        %224 = sbr.rel (%p222) target = $region36
      $region35: #{tpu_custom_call.1} parent=5 // pred_region
        %s225 = ssub.s32 %s11, 2
        // Predicated region
        $region37: #{tpu_custom_call.1} parent=35 // pred_check
          %p226 = pneg %p108
        $region38: #{tpu_custom_call.1} parent=35 // pred_check_branch
          %228 = sbr.rel (%p226) target = $region40
        $region39: #{tpu_custom_call.1} parent=35 // pred_region
          %s229 = sand.u32 %s93, 1
          %s230 = scalar_lea.sflag [#allocation3], %s229
          %s231 = sand.u32 %s93, 1
          %s232 = smul.addr %s231, 8
          %s233 = scalar_lea.vmem [#allocation2], %s232
          %234 = dma.done %s230, 128
        $region40: #{tpu_custom_call.1} parent=35 // pred_fallthru
          _
      $region36: #{tpu_custom_call.1} parent=5 // pred_fallthru
        _
    $region6: #{tpu_custom_call.1} parent=1 // loop_footer
      %s15 = sadd.s32 1, %s11
    $region7: #{tpu_custom_call.1} parent=1 // loop_footer_branch
      %10 = sbr.rel target = $region3
    $region8: #{tpu_custom_call.1} parent=1 // loop_exit
      _
    %235 = vsyncpa [#allocation3], 1
    %s236 = scalar_lea.sflag [#allocation3], 1
    %237 = vsyncpa %s236, 1

</llo_original>
